<compile_context>
chip_gen: v7x
topology: tpu7x:2x2x1
jax: 0.10.0
libtpu: 0.0.40
codegen_flags: <defaults>
</compile_context>

<pallas_src>
import jax
import jax.numpy as jnp
from jax.experimental import pallas as pl
from jax.experimental.pallas import tpu as pltpu

SEQ_LEN = 8          # encoder sequence length
NUM_CLASSES = 8
HIDDEN = 32          # input_dim == hidden_dim of the decoder LSTM
ENC_HIDDEN = 32      # encoder_hidden_state (== HIDDEN, see note above)
NUM_LAYERS = 3


def _decoder_kernel(
    x_ref,         # (1, C)
    state_ref,     # (2L, H): rows 0:L = h, rows L:2L = c
    enc_ref,       # (S, E)
    attn_w_ref,    # (H+E, H): rows 0:H = W_attn_h^T, rows H:H+E = W_attn_e^T
    attn_bv_ref,   # (2, H):   row 0 = b_attn, row 1 = v
    lstm_w_ref,    # (C+E+5H, 4H): pre-transposed per-layer slabs (offsets below)
    lstm_b_ref,    # (L, 4H):  b_ih + b_hh per layer
    out_w_ref,     # (H+E, C): rows 0:H = W_out_h^T, rows H:H+E = W_out_w^T
    out_b_ref,     # (1, C)
    out_ref,       # (1, C)
    new_state_ref, # (2L, H)
):
    C, H, E, L = NUM_CLASSES, HIDDEN, ENC_HIDDEN, NUM_LAYERS

    enc = enc_ref[...]
    h_last = state_ref[L - 1:L, :]                                 # (1, H)

    # ---- attention: a = softmax_t( v . tanh(W_h h_last + W_e enc_t + b) ) ----
    energy = jnp.tanh(
        jnp.dot(h_last, attn_w_ref[0:H, :], preferred_element_type=jnp.float32)
        + jnp.dot(enc, attn_w_ref[H:H + E, :], preferred_element_type=jnp.float32)
        + attn_bv_ref[0:1, :])                                     # (S, H)
    score = jnp.sum(energy * attn_bv_ref[1:2, :], axis=1, keepdims=True)  # (S, 1)
    score = score - jnp.max(score, axis=0, keepdims=True)
    p = jnp.exp(score)
    a = p * pl.reciprocal(jnp.sum(p, axis=0, keepdims=True), approx=True)  # (S, 1)

    # ---- weighted = bmm(a, encoder_outputs): VPU multiply + sublane reduce ----
    weighted = jnp.sum(a * enc, axis=0, keepdims=True)             # (1, E)

    def gates_to_hc(g, c_prev):
        i = jax.nn.sigmoid(g[:, 0 * H:1 * H])
        f = jax.nn.sigmoid(g[:, 1 * H:2 * H])
        gg = jnp.tanh(g[:, 2 * H:3 * H])
        o = jax.nn.sigmoid(g[:, 3 * H:4 * H])
        c_new = f * c_prev + i * gg
        h_new = o * jnp.tanh(c_new)
        return h_new, c_new

    # weight-slab row offsets (all multiples of 8 -> sublane-aligned slices)
    o0x, o0w, o0h = 0, C, C + E
    o1i, o1h = C + E + H, C + E + 2 * H
    o2i, o2h = C + E + 3 * H, C + E + 4 * H

    # TODO(synk): nn.LSTM dropout=0.35 is active only in training mode; eval
    # (inference) semantics are implemented here.
    # layer 0: input is [x ; weighted] -> split-weight matmuls (no concat)
    g0 = (jnp.dot(x_ref[...], lstm_w_ref[o0x:o0x + C, :],
                  preferred_element_type=jnp.float32)
          + jnp.dot(weighted, lstm_w_ref[o0w:o0w + E, :],
                    preferred_element_type=jnp.float32)
          + jnp.dot(state_ref[0:1, :], lstm_w_ref[o0h:o0h + H, :],
                    preferred_element_type=jnp.float32)
          + lstm_b_ref[0:1, :])
    h0, c0 = gates_to_hc(g0, state_ref[L + 0:L + 1, :])

    g1 = (jnp.dot(h0, lstm_w_ref[o1i:o1i + H, :],
                  preferred_element_type=jnp.float32)
          + jnp.dot(state_ref[1:2, :], lstm_w_ref[o1h:o1h + H, :],
                    preferred_element_type=jnp.float32)
          + lstm_b_ref[1:2, :])
    h1, c1 = gates_to_hc(g1, state_ref[L + 1:L + 2, :])

    g2 = (jnp.dot(h1, lstm_w_ref[o2i:o2i + H, :],
                  preferred_element_type=jnp.float32)
          + jnp.dot(state_ref[2:3, :], lstm_w_ref[o2h:o2h + H, :],
                    preferred_element_type=jnp.float32)
          + lstm_b_ref[2:3, :])
    h2, c2 = gates_to_hc(g2, state_ref[L + 2:L + 3, :])

    # single store for the whole new (h, c) state
    new_state_ref[...] = jnp.concatenate([h0, h1, h2, c0, c1, c2], axis=0)

    # ---- output = Linear([h2 ; weighted]) as split-weight matmuls ----
    out_ref[...] = (
        jnp.dot(h2, out_w_ref[0:H, :], preferred_element_type=jnp.float32)
        + jnp.dot(weighted, out_w_ref[H:H + E, :], preferred_element_type=jnp.float32)
        + out_b_ref[...])


def pack_params(params):
    """Host-side one-time transform: transpose to (in, out) and pack into slabs."""
    C, H, E = NUM_CLASSES, HIDDEN, ENC_HIDDEN
    f32 = jnp.float32
    attn_w = jnp.concatenate(
        [params["w_attn"][:, :H].T, params["w_attn"][:, H:H + E].T],
        axis=0).astype(f32)                                           # (H+E, H)
    attn_bv = jnp.concatenate([params["b_attn"], params["v"]],
                              axis=0).astype(f32)                     # (2, H)
    lstm_w = jnp.concatenate(
        [params["w_ih0"][:, :C].T,            # (C, 4H)  x part of layer-0 input
         params["w_ih0"][:, C:C + E].T,       # (E, 4H)  weighted part
         params["w_hh0"].T,                   # (H, 4H)
         params["w_ih1"].T, params["w_hh1"].T,
         params["w_ih2"].T, params["w_hh2"].T],
        axis=0).astype(f32)                                           # (C+E+5H, 4H)
    lstm_b = jnp.concatenate(
        [params["b_ih0"] + params["b_hh0"],
         params["b_ih1"] + params["b_hh1"],
         params["b_ih2"] + params["b_hh2"]],
        axis=0).astype(f32)                                           # (L, 4H)
    out_w = jnp.concatenate(
        [params["w_out"][:, :H].T, params["w_out"][:, H:2 * H].T],
        axis=0).astype(f32)                                           # (H+E, C)
    out_b = params["b_out"].astype(f32)                               # (1, C)
    return attn_w, attn_bv, lstm_w, lstm_b, out_w, out_b


def attention_decoder_forward(x, input_hidden, input_cell, encoder_outputs, packed):
    C, H, E, L, S = NUM_CLASSES, HIDDEN, ENC_HIDDEN, NUM_LAYERS, SEQ_LEN
    attn_w, attn_bv, lstm_w, lstm_b, out_w, out_b = packed

    x2 = x.reshape(1, C).astype(jnp.float32)
    state = jnp.concatenate(
        [input_hidden.reshape(L, H), input_cell.reshape(L, H)],
        axis=0).astype(jnp.float32)                                   # (2L, H)
    enc2 = encoder_outputs.reshape(S, E).astype(jnp.float32)

    vmem = pl.BlockSpec(memory_space=pltpu.MemorySpace.VMEM)
    # TODO(synk): the PyTorch module is a single decode step with batch=1; true
    # throughput wins (weight-resident grid over decode steps / batched streams,
    # input_output_aliases on the state slab, bf16 weight storage on v6e/v7x)
    # require changing the call contract, so per-step dispatch is kept here.
    out, new_state = pl.pallas_call(
        _decoder_kernel,
        out_shape=(jax.ShapeDtypeStruct((1, C), jnp.float32),
                   jax.ShapeDtypeStruct((2 * L, H), jnp.float32)),
        in_specs=[vmem] * 9,
        out_specs=(vmem, vmem),
    )(x2, state, enc2, attn_w, attn_bv, lstm_w, lstm_b, out_w, out_b)

    hn = new_state[0:L].reshape(L, 1, H)
    cn = new_state[L:2 * L].reshape(L, 1, H)
    return out, hn, cn


def reference_forward(x, input_hidden, input_cell, encoder_outputs, params):
    """Pure-JAX mirror of the PyTorch forward (eval mode), for verification."""
    C, H, E, L, S = NUM_CLASSES, HIDDEN, ENC_HIDDEN, NUM_LAYERS, SEQ_LEN
    xr = x.reshape(1, C)
    h = input_hidden.reshape(L, H)
    c = input_cell.reshape(L, H)
    enc = encoder_outputs.reshape(S, E)

    h_rep = jnp.broadcast_to(h[2:3, :], (S, H))
    energy = jnp.tanh(jnp.concatenate([h_rep, enc], 1) @ params["w_attn"].T
                      + params["b_attn"])
    score = energy @ params["v"].T
    a = jax.nn.softmax(score, axis=0)
    weighted = a.T @ enc
    rnn_in = jnp.concatenate([xr, weighted], axis=1)

    def cell(inp, hp, cp, wih, whh, bih, bhh):
        g = inp @ wih.T + bih + hp @ whh.T + bhh
        i = jax.nn.sigmoid(g[:, 0 * H:1 * H])
        f = jax.nn.sigmoid(g[:, 1 * H:2 * H])
        gg = jnp.tanh(g[:, 2 * H:3 * H])
        o = jax.nn.sigmoid(g[:, 3 * H:4 * H])
        cn = f * cp + i * gg
        return o * jnp.tanh(cn), cn

    h0, c0 = cell(rnn_in, h[0:1], c[0:1], params["w_ih0"], params["w_hh0"],
                  params["b_ih0"], params["b_hh0"])
    h1, c1 = cell(h0, h[1:2], c[1:2], params["w_ih1"], params["w_hh1"],
                  params["b_ih1"], params["b_hh1"])
    h2, c2 = cell(h1, h[2:3], c[2:3], params["w_ih2"], params["w_hh2"],
                  params["b_ih2"], params["b_hh2"])
    out = jnp.concatenate([h2, weighted], 1) @ params["w_out"].T + params["b_out"]
    return out, jnp.concatenate([h0, h1, h2], 0), jnp.concatenate([c0, c1, c2], 0)


def init_params(key):
    C, H, E = NUM_CLASSES, HIDDEN, ENC_HIDDEN

    def u(k, shape, fan_in):
        s = 1.0 / float(fan_in) ** 0.5
        return jax.random.uniform(k, shape, jnp.float32, -s, s)

    ks = iter(jax.random.split(key, 24))
    p = {
        "w_attn": u(next(ks), (H, E + H), E + H),
        "b_attn": u(next(ks), (1, H), E + H),
        "v":      u(next(ks), (1, H), H),
        "w_out":  u(next(ks), (C, 2 * H), 2 * H),
        "b_out":  u(next(ks), (1, C), 2 * H),
    }
    # LSTM layer 0 input size = C + E (order of cat(x, weighted)); layers 1,2: H
    in_sizes = [C + E, H, H]
    for l in range(NUM_LAYERS):
        p[f"w_ih{l}"] = u(next(ks), (4 * H, in_sizes[l]), H)
        p[f"w_hh{l}"] = u(next(ks), (4 * H, H), H)
        p[f"b_ih{l}"] = u(next(ks), (1, 4 * H), H)
        p[f"b_hh{l}"] = u(next(ks), (1, 4 * H), H)
    return p


if __name__ == "__main__":
    key = jax.random.PRNGKey(0)
    kp, kx, kh, kc, ke = jax.random.split(key, 5)
    params = init_params(kp)
    packed = pack_params(params)

    x = jax.random.normal(kx, (1, 1, NUM_CLASSES), jnp.float32)
    input_hidden = jax.random.normal(kh, (NUM_LAYERS, 1, HIDDEN), jnp.float32)
    input_cell = jax.random.normal(kc, (NUM_LAYERS, 1, HIDDEN), jnp.float32)
    encoder_outputs = jax.random.normal(ke, (1, SEQ_LEN, ENC_HIDDEN), jnp.float32)

    out, hn, cn = attention_decoder_forward(
        x, input_hidden, input_cell, encoder_outputs, packed)
    jax.block_until_ready((out, hn, cn))

    ref_out, ref_hn, ref_cn = reference_forward(
        x, input_hidden, input_cell, encoder_outputs, params)

    assert out.shape == (1, NUM_CLASSES)
    assert hn.shape == (NUM_LAYERS, 1, HIDDEN) and cn.shape == (NUM_LAYERS, 1, HIDDEN)
    # tolerance covers the EUP approximate reciprocal in the softmax
    assert jnp.allclose(out, ref_out, rtol=5e-3, atol=5e-3)
    assert jnp.allclose(hn.reshape(NUM_LAYERS, HIDDEN), ref_hn, rtol=5e-3, atol=5e-3)
    assert jnp.allclose(cn.reshape(NUM_LAYERS, HIDDEN), ref_cn, rtol=5e-3, atol=5e-3)

    print("KERNEL_OK")
</pallas_src>

<mosaic_0001>
module attributes {stable_mosaic.version = 11 : i64} {
  func.func @_decoder_kernel(%arg0: memref<1x8xf32, #tpu.memory_space<vmem>>, %arg1: memref<6x32xf32, #tpu.memory_space<vmem>>, %arg2: memref<8x32xf32, #tpu.memory_space<vmem>>, %arg3: memref<64x32xf32, #tpu.memory_space<vmem>>, %arg4: memref<2x32xf32, #tpu.memory_space<vmem>>, %arg5: memref<200x128xf32, #tpu.memory_space<vmem>>, %arg6: memref<3x128xf32, #tpu.memory_space<vmem>>, %arg7: memref<64x8xf32, #tpu.memory_space<vmem>>, %arg8: memref<1x8xf32, #tpu.memory_space<vmem>>, %arg9: memref<1x8xf32, #tpu.memory_space<vmem>>, %arg10: memref<6x32xf32, #tpu.memory_space<vmem>>) attributes {dimension_semantics = [], scalar_prefetch = 0 : i64, scratch_operands = 0 : i64, tpu.core_type = #tpu.core_type<tc>} {
    %c0 = arith.constant 0 : index
    %c0_0 = arith.constant 0 : index
    %0 = vector.load %arg2[%c0, %c0_0] : memref<8x32xf32, #tpu.memory_space<vmem>>, vector<8x32xf32>
    %c2 = arith.constant 2 : index
    %c0_1 = arith.constant 0 : index
    %1 = vector.load %arg1[%c2, %c0_1] : memref<6x32xf32, #tpu.memory_space<vmem>>, vector<1x32xf32>
    %c0_2 = arith.constant 0 : index
    %c0_3 = arith.constant 0 : index
    %2 = vector.load %arg3[%c0_2, %c0_3] : memref<64x32xf32, #tpu.memory_space<vmem>>, vector<32x32xf32>
    %cst = arith.constant dense<0.000000e+00> : vector<1x32xf32>
    %3 = tpu.matmul %1, %2, %cst {dimension_numbers = #tpu.dot_dimension_numbers<[1], [0], [0], [1], [0, 0, 1, 1], [], []>} : vector<1x32xf32>, vector<32x32xf32>, vector<1x32xf32> -> vector<1x32xf32>
    %c32 = arith.constant 32 : index
    %c0_4 = arith.constant 0 : index
    %4 = vector.load %arg3[%c32, %c0_4] : memref<64x32xf32, #tpu.memory_space<vmem>>, vector<32x32xf32>
    %cst_5 = arith.constant dense<0.000000e+00> : vector<8x32xf32>
    %5 = tpu.matmul %0, %4, %cst_5 {dimension_numbers = #tpu.dot_dimension_numbers<[1], [0], [0], [1], [0, 0, 1, 1], [], []>} : vector<8x32xf32>, vector<32x32xf32>, vector<8x32xf32> -> vector<8x32xf32>
    %6 = vector.broadcast %3 : vector<1x32xf32> to vector<8x32xf32>
    %7 = arith.addf %6, %5 : vector<8x32xf32>
    %c0_6 = arith.constant 0 : index
    %c0_7 = arith.constant 0 : index
    %8 = vector.load %arg4[%c0_6, %c0_7] : memref<2x32xf32, #tpu.memory_space<vmem>>, vector<1x32xf32>
    %9 = vector.broadcast %8 : vector<1x32xf32> to vector<8x32xf32>
    %10 = arith.addf %7, %9 : vector<8x32xf32>
    %11 = math.tanh %10 : vector<8x32xf32>
    %c1 = arith.constant 1 : index
    %c0_8 = arith.constant 0 : index
    %12 = vector.load %arg4[%c1, %c0_8] : memref<2x32xf32, #tpu.memory_space<vmem>>, vector<1x32xf32>
    %13 = vector.broadcast %12 : vector<1x32xf32> to vector<8x32xf32>
    %14 = arith.mulf %11, %13 : vector<8x32xf32>
    %cst_9 = arith.constant dense<0.000000e+00> : vector<8xf32>
    %15 = vector.multi_reduction <add>, %14, %cst_9 [1] : vector<8x32xf32> to vector<8xf32>
    %16 = vector.shape_cast %15 : vector<8xf32> to vector<8x1xf32>
    %cst_10 = arith.constant dense<0xFF800000> : vector<1xf32>
    %17 = vector.multi_reduction <maximumf>, %16, %cst_10 [0] : vector<8x1xf32> to vector<1xf32>
    %18 = vector.shape_cast %17 : vector<1xf32> to vector<1x1xf32>
    %19 = vector.broadcast %18 : vector<1x1xf32> to vector<8x1xf32>
    %20 = arith.subf %16, %19 : vector<8x1xf32>
    %21 = math.exp %20 : vector<8x1xf32>
    %cst_11 = arith.constant dense<0.000000e+00> : vector<1xf32>
    %22 = vector.multi_reduction <add>, %21, %cst_11 [0] : vector<8x1xf32> to vector<1xf32>
    %23 = vector.shape_cast %22 : vector<1xf32> to vector<1x1xf32>
    %24 = tpu.reciprocal %23 {approx = true} : vector<1x1xf32> -> vector<1x1xf32>
    %25 = vector.broadcast %24 : vector<1x1xf32> to vector<8x1xf32>
    %26 = arith.mulf %21, %25 : vector<8x1xf32>
    %27 = vector.broadcast %26 : vector<8x1xf32> to vector<8x32xf32>
    %28 = arith.mulf %27, %0 : vector<8x32xf32>
    %cst_12 = arith.constant dense<0.000000e+00> : vector<32xf32>
    %29 = vector.multi_reduction <add>, %28, %cst_12 [0] : vector<8x32xf32> to vector<32xf32>
    %30 = vector.shape_cast %29 : vector<32xf32> to vector<1x32xf32>
    %c0_13 = arith.constant 0 : index
    %c0_14 = arith.constant 0 : index
    %31 = vector.load %arg0[%c0_13, %c0_14] : memref<1x8xf32, #tpu.memory_space<vmem>>, vector<1x8xf32>
    %c0_15 = arith.constant 0 : index
    %c0_16 = arith.constant 0 : index
    %32 = vector.load %arg5[%c0_15, %c0_16] : memref<200x128xf32, #tpu.memory_space<vmem>>, vector<8x128xf32>
    %cst_17 = arith.constant dense<0.000000e+00> : vector<1x128xf32>
    %33 = tpu.matmul %31, %32, %cst_17 {dimension_numbers = #tpu.dot_dimension_numbers<[1], [0], [0], [1], [0, 0, 1, 1], [], []>} : vector<1x8xf32>, vector<8x128xf32>, vector<1x128xf32> -> vector<1x128xf32>
    %c8 = arith.constant 8 : index
    %c0_18 = arith.constant 0 : index
    %34 = vector.load %arg5[%c8, %c0_18] : memref<200x128xf32, #tpu.memory_space<vmem>>, vector<32x128xf32>
    %cst_19 = arith.constant dense<0.000000e+00> : vector<1x128xf32>
    %35 = tpu.matmul %30, %34, %cst_19 {dimension_numbers = #tpu.dot_dimension_numbers<[1], [0], [0], [1], [0, 0, 1, 1], [], []>} : vector<1x32xf32>, vector<32x128xf32>, vector<1x128xf32> -> vector<1x128xf32>
    %36 = arith.addf %33, %35 : vector<1x128xf32>
    %c0_20 = arith.constant 0 : index
    %c0_21 = arith.constant 0 : index
    %37 = vector.load %arg1[%c0_20, %c0_21] : memref<6x32xf32, #tpu.memory_space<vmem>>, vector<1x32xf32>
    %c40 = arith.constant 40 : index
    %c0_22 = arith.constant 0 : index
    %38 = vector.load %arg5[%c40, %c0_22] : memref<200x128xf32, #tpu.memory_space<vmem>>, vector<32x128xf32>
    %cst_23 = arith.constant dense<0.000000e+00> : vector<1x128xf32>
    %39 = tpu.matmul %37, %38, %cst_23 {dimension_numbers = #tpu.dot_dimension_numbers<[1], [0], [0], [1], [0, 0, 1, 1], [], []>} : vector<1x32xf32>, vector<32x128xf32>, vector<1x128xf32> -> vector<1x128xf32>
    %40 = arith.addf %36, %39 : vector<1x128xf32>
    %c0_24 = arith.constant 0 : index
    %c0_25 = arith.constant 0 : index
    %41 = vector.load %arg6[%c0_24, %c0_25] : memref<3x128xf32, #tpu.memory_space<vmem>>, vector<1x128xf32>
    %42 = arith.addf %40, %41 : vector<1x128xf32>
    %c3 = arith.constant 3 : index
    %c0_26 = arith.constant 0 : index
    %43 = vector.load %arg1[%c3, %c0_26] : memref<6x32xf32, #tpu.memory_space<vmem>>, vector<1x32xf32>
    %44 = vector.extract_strided_slice %42 {offsets = [0, 0], sizes = [1, 32], strides = [1, 1]} : vector<1x128xf32> to vector<1x32xf32>
    %45 = arith.negf %44 : vector<1x32xf32>
    %46 = math.exp %45 : vector<1x32xf32>
    %cst_27 = arith.constant 1.000000e+00 : f32
    %47 = vector.broadcast %cst_27 : f32 to vector<1x32xf32>
    %48 = arith.addf %47, %46 : vector<1x32xf32>
    %49 = arith.divf %47, %48 : vector<1x32xf32>
    %50 = vector.extract_strided_slice %42 {offsets = [0, 32], sizes = [1, 32], strides = [1, 1]} : vector<1x128xf32> to vector<1x32xf32>
    %51 = arith.negf %50 : vector<1x32xf32>
    %52 = math.exp %51 : vector<1x32xf32>
    %cst_28 = arith.constant 1.000000e+00 : f32
    %53 = vector.broadcast %cst_28 : f32 to vector<1x32xf32>
    %54 = arith.addf %53, %52 : vector<1x32xf32>
    %55 = arith.divf %53, %54 : vector<1x32xf32>
    %56 = vector.extract_strided_slice %42 {offsets = [0, 64], sizes = [1, 32], strides = [1, 1]} : vector<1x128xf32> to vector<1x32xf32>
    %57 = math.tanh %56 : vector<1x32xf32>
    %58 = vector.extract_strided_slice %42 {offsets = [0, 96], sizes = [1, 32], strides = [1, 1]} : vector<1x128xf32> to vector<1x32xf32>
    %59 = arith.negf %58 : vector<1x32xf32>
    %60 = math.exp %59 : vector<1x32xf32>
    %cst_29 = arith.constant 1.000000e+00 : f32
    %61 = vector.broadcast %cst_29 : f32 to vector<1x32xf32>
    %62 = arith.addf %61, %60 : vector<1x32xf32>
    %63 = arith.divf %61, %62 : vector<1x32xf32>
    %64 = arith.mulf %55, %43 : vector<1x32xf32>
    %65 = arith.mulf %49, %57 : vector<1x32xf32>
    %66 = arith.addf %64, %65 : vector<1x32xf32>
    %67 = math.tanh %66 : vector<1x32xf32>
    %68 = arith.mulf %63, %67 : vector<1x32xf32>
    %c72 = arith.constant 72 : index
    %c0_30 = arith.constant 0 : index
    %69 = vector.load %arg5[%c72, %c0_30] : memref<200x128xf32, #tpu.memory_space<vmem>>, vector<32x128xf32>
    %cst_31 = arith.constant dense<0.000000e+00> : vector<1x128xf32>
    %70 = tpu.matmul %68, %69, %cst_31 {dimension_numbers = #tpu.dot_dimension_numbers<[1], [0], [0], [1], [0, 0, 1, 1], [], []>} : vector<1x32xf32>, vector<32x128xf32>, vector<1x128xf32> -> vector<1x128xf32>
    %c1_32 = arith.constant 1 : index
    %c0_33 = arith.constant 0 : index
    %71 = vector.load %arg1[%c1_32, %c0_33] : memref<6x32xf32, #tpu.memory_space<vmem>>, vector<1x32xf32>
    %c104 = arith.constant 104 : index
    %c0_34 = arith.constant 0 : index
    %72 = vector.load %arg5[%c104, %c0_34] : memref<200x128xf32, #tpu.memory_space<vmem>>, vector<32x128xf32>
    %cst_35 = arith.constant dense<0.000000e+00> : vector<1x128xf32>
    %73 = tpu.matmul %71, %72, %cst_35 {dimension_numbers = #tpu.dot_dimension_numbers<[1], [0], [0], [1], [0, 0, 1, 1], [], []>} : vector<1x32xf32>, vector<32x128xf32>, vector<1x128xf32> -> vector<1x128xf32>
    %74 = arith.addf %70, %73 : vector<1x128xf32>
    %c1_36 = arith.constant 1 : index
    %c0_37 = arith.constant 0 : index
    %75 = vector.load %arg6[%c1_36, %c0_37] : memref<3x128xf32, #tpu.memory_space<vmem>>, vector<1x128xf32>
    %76 = arith.addf %74, %75 : vector<1x128xf32>
    %c4 = arith.constant 4 : index
    %c0_38 = arith.constant 0 : index
    %77 = vector.load %arg1[%c4, %c0_38] : memref<6x32xf32, #tpu.memory_space<vmem>>, vector<1x32xf32>
    %78 = vector.extract_strided_slice %76 {offsets = [0, 0], sizes = [1, 32], strides = [1, 1]} : vector<1x128xf32> to vector<1x32xf32>
    %79 = arith.negf %78 : vector<1x32xf32>
    %80 = math.exp %79 : vector<1x32xf32>
    %cst_39 = arith.constant 1.000000e+00 : f32
    %81 = vector.broadcast %cst_39 : f32 to vector<1x32xf32>
    %82 = arith.addf %81, %80 : vector<1x32xf32>
    %83 = arith.divf %81, %82 : vector<1x32xf32>
    %84 = vector.extract_strided_slice %76 {offsets = [0, 32], sizes = [1, 32], strides = [1, 1]} : vector<1x128xf32> to vector<1x32xf32>
    %85 = arith.negf %84 : vector<1x32xf32>
    %86 = math.exp %85 : vector<1x32xf32>
    %cst_40 = arith.constant 1.000000e+00 : f32
    %87 = vector.broadcast %cst_40 : f32 to vector<1x32xf32>
    %88 = arith.addf %87, %86 : vector<1x32xf32>
    %89 = arith.divf %87, %88 : vector<1x32xf32>
    %90 = vector.extract_strided_slice %76 {offsets = [0, 64], sizes = [1, 32], strides = [1, 1]} : vector<1x128xf32> to vector<1x32xf32>
    %91 = math.tanh %90 : vector<1x32xf32>
    %92 = vector.extract_strided_slice %76 {offsets = [0, 96], sizes = [1, 32], strides = [1, 1]} : vector<1x128xf32> to vector<1x32xf32>
    %93 = arith.negf %92 : vector<1x32xf32>
    %94 = math.exp %93 : vector<1x32xf32>
    %cst_41 = arith.constant 1.000000e+00 : f32
    %95 = vector.broadcast %cst_41 : f32 to vector<1x32xf32>
    %96 = arith.addf %95, %94 : vector<1x32xf32>
    %97 = arith.divf %95, %96 : vector<1x32xf32>
    %98 = arith.mulf %89, %77 : vector<1x32xf32>
    %99 = arith.mulf %83, %91 : vector<1x32xf32>
    %100 = arith.addf %98, %99 : vector<1x32xf32>
    %101 = math.tanh %100 : vector<1x32xf32>
    %102 = arith.mulf %97, %101 : vector<1x32xf32>
    %c136 = arith.constant 136 : index
    %c0_42 = arith.constant 0 : index
    %103 = vector.load %arg5[%c136, %c0_42] : memref<200x128xf32, #tpu.memory_space<vmem>>, vector<32x128xf32>
    %cst_43 = arith.constant dense<0.000000e+00> : vector<1x128xf32>
    %104 = tpu.matmul %102, %103, %cst_43 {dimension_numbers = #tpu.dot_dimension_numbers<[1], [0], [0], [1], [0, 0, 1, 1], [], []>} : vector<1x32xf32>, vector<32x128xf32>, vector<1x128xf32> -> vector<1x128xf32>
    %c2_44 = arith.constant 2 : index
    %c0_45 = arith.constant 0 : index
    %105 = vector.load %arg1[%c2_44, %c0_45] : memref<6x32xf32, #tpu.memory_space<vmem>>, vector<1x32xf32>
    %c168 = arith.constant 168 : index
    %c0_46 = arith.constant 0 : index
    %106 = vector.load %arg5[%c168, %c0_46] : memref<200x128xf32, #tpu.memory_space<vmem>>, vector<32x128xf32>
    %cst_47 = arith.constant dense<0.000000e+00> : vector<1x128xf32>
    %107 = tpu.matmul %105, %106, %cst_47 {dimension_numbers = #tpu.dot_dimension_numbers<[1], [0], [0], [1], [0, 0, 1, 1], [], []>} : vector<1x32xf32>, vector<32x128xf32>, vector<1x128xf32> -> vector<1x128xf32>
    %108 = arith.addf %104, %107 : vector<1x128xf32>
    %c2_48 = arith.constant 2 : index
    %c0_49 = arith.constant 0 : index
    %109 = vector.load %arg6[%c2_48, %c0_49] : memref<3x128xf32, #tpu.memory_space<vmem>>, vector<1x128xf32>
    %110 = arith.addf %108, %109 : vector<1x128xf32>
    %c5 = arith.constant 5 : index
    %c0_50 = arith.constant 0 : index
    %111 = vector.load %arg1[%c5, %c0_50] : memref<6x32xf32, #tpu.memory_space<vmem>>, vector<1x32xf32>
    %112 = vector.extract_strided_slice %110 {offsets = [0, 0], sizes = [1, 32], strides = [1, 1]} : vector<1x128xf32> to vector<1x32xf32>
    %113 = arith.negf %112 : vector<1x32xf32>
    %114 = math.exp %113 : vector<1x32xf32>
    %cst_51 = arith.constant 1.000000e+00 : f32
    %115 = vector.broadcast %cst_51 : f32 to vector<1x32xf32>
    %116 = arith.addf %115, %114 : vector<1x32xf32>
    %117 = arith.divf %115, %116 : vector<1x32xf32>
    %118 = vector.extract_strided_slice %110 {offsets = [0, 32], sizes = [1, 32], strides = [1, 1]} : vector<1x128xf32> to vector<1x32xf32>
    %119 = arith.negf %118 : vector<1x32xf32>
    %120 = math.exp %119 : vector<1x32xf32>
    %cst_52 = arith.constant 1.000000e+00 : f32
    %121 = vector.broadcast %cst_52 : f32 to vector<1x32xf32>
    %122 = arith.addf %121, %120 : vector<1x32xf32>
    %123 = arith.divf %121, %122 : vector<1x32xf32>
    %124 = vector.extract_strided_slice %110 {offsets = [0, 64], sizes = [1, 32], strides = [1, 1]} : vector<1x128xf32> to vector<1x32xf32>
    %125 = math.tanh %124 : vector<1x32xf32>
    %126 = vector.extract_strided_slice %110 {offsets = [0, 96], sizes = [1, 32], strides = [1, 1]} : vector<1x128xf32> to vector<1x32xf32>
    %127 = arith.negf %126 : vector<1x32xf32>
    %128 = math.exp %127 : vector<1x32xf32>
    %cst_53 = arith.constant 1.000000e+00 : f32
    %129 = vector.broadcast %cst_53 : f32 to vector<1x32xf32>
    %130 = arith.addf %129, %128 : vector<1x32xf32>
    %131 = arith.divf %129, %130 : vector<1x32xf32>
    %132 = arith.mulf %123, %111 : vector<1x32xf32>
    %133 = arith.mulf %117, %125 : vector<1x32xf32>
    %134 = arith.addf %132, %133 : vector<1x32xf32>
    %135 = math.tanh %134 : vector<1x32xf32>
    %136 = arith.mulf %131, %135 : vector<1x32xf32>
    %137 = tpu.concatenate %68, %102, %136, %66, %100, %134 in 0 : vector<1x32xf32>, vector<1x32xf32>, vector<1x32xf32>, vector<1x32xf32>, vector<1x32xf32>, vector<1x32xf32> -> vector<6x32xf32>
    %c0_54 = arith.constant 0 : index
    %c0_55 = arith.constant 0 : index
    %138 = vector.load %arg10[%c0_54, %c0_55] : memref<6x32xf32, #tpu.memory_space<vmem>>, vector<6x32xf32>
    tpu.vector_store %arg10[%c0_54, %c0_55], %137 {strides = array<i32>} : memref<6x32xf32, #tpu.memory_space<vmem>>, vector<6x32xf32>,
    %c0_56 = arith.constant 0 : index
    %c0_57 = arith.constant 0 : index
    %139 = vector.load %arg7[%c0_56, %c0_57] : memref<64x8xf32, #tpu.memory_space<vmem>>, vector<32x8xf32>
    %cst_58 = arith.constant dense<0.000000e+00> : vector<1x8xf32>
    %140 = tpu.matmul %136, %139, %cst_58 {dimension_numbers = #tpu.dot_dimension_numbers<[1], [0], [0], [1], [0, 0, 1, 1], [], []>} : vector<1x32xf32>, vector<32x8xf32>, vector<1x8xf32> -> vector<1x8xf32>
    %c32_59 = arith.constant 32 : index
    %c0_60 = arith.constant 0 : index
    %141 = vector.load %arg7[%c32_59, %c0_60] : memref<64x8xf32, #tpu.memory_space<vmem>>, vector<32x8xf32>
    %cst_61 = arith.constant dense<0.000000e+00> : vector<1x8xf32>
    %142 = tpu.matmul %30, %141, %cst_61 {dimension_numbers = #tpu.dot_dimension_numbers<[1], [0], [0], [1], [0, 0, 1, 1], [], []>} : vector<1x32xf32>, vector<32x8xf32>, vector<1x8xf32> -> vector<1x8xf32>
    %143 = arith.addf %140, %142 : vector<1x8xf32>
    %c0_62 = arith.constant 0 : index
    %c0_63 = arith.constant 0 : index
    %144 = vector.load %arg8[%c0_62, %c0_63] : memref<1x8xf32, #tpu.memory_space<vmem>>, vector<1x8xf32>
    %145 = arith.addf %143, %144 : vector<1x8xf32>
    %c0_64 = arith.constant 0 : index
    %c0_65 = arith.constant 0 : index
    %146 = vector.load %arg9[%c0_64, %c0_65] : memref<1x8xf32, #tpu.memory_space<vmem>>, vector<1x8xf32>
    tpu.vector_store %arg9[%c0_64, %c0_65], %145 {strides = array<i32>} : memref<1x8xf32, #tpu.memory_space<vmem>>, vector<1x8xf32>,
    return
  }
}

</mosaic_0001>

<llo_original>
// kernel: tpu_custom_call.1
$region0: #{tpu_custom_call.1}
  #allocation0 [shape = 'u32[]', space=smem, size = 0x4, offset = 0x4, fixed_abs, tag = 'smem constant byte address 0x4 - core index']
  #allocation1 [shape = 'u32[144,128]{1,0:T(1,128)}', space=vmem, size = 0x12000, scoped, tag = 'internal scratch']
  %s0 = inlined_call_operand.vmem [shape: f32[1,8], index: 0, kind: input, shape index: {}]
  %s1 = inlined_call_operand.vmem [shape: f32[6,32], index: 1, kind: input, shape index: {}]
  %s2 = inlined_call_operand.vmem [shape: f32[8,32], index: 2, kind: input, shape index: {}]
  %s3 = inlined_call_operand.vmem [shape: f32[64,32], index: 3, kind: input, shape index: {}]
  %s4 = inlined_call_operand.vmem [shape: f32[2,32], index: 4, kind: input, shape index: {}]
  %s5 = inlined_call_operand.hbm [shape: f32[200,128], index: 5, kind: input, shape index: {}]
  %s6 = inlined_call_operand.vmem [shape: f32[3,128], index: 6, kind: input, shape index: {}]
  %s7 = inlined_call_operand.vmem [shape: f32[64,8], index: 7, kind: input, shape index: {}]
  %s8 = inlined_call_operand.vmem [shape: f32[1,8], index: 8, kind: input, shape index: {}]
  %s9 = inlined_call_operand.hbm [shape: f32[1,8], index: 9, kind: output, shape index: {0}]
  %s10 = inlined_call_operand.hbm [shape: f32[6,32], index: 10, kind: output, shape index: {1}]
  %11 = xla_tuple %s9, %s10
  %s12 = sld [smem:[#allocation0]]
  $region58: #{tpu_custom_call.1} parent=0
    _
  %s14 = ssub.s32 1, %s12
  %s15 = scalar_select 0, %s14, %s12
  $region1: #{tpu_custom_call.1} parent=0
    #allocation2 [shape = 'u8[102400]{0}', space=vmem, size = 0x19000, scoped, tag = 'input window, operand 5, single buffered']
    #allocation3 [shape = 's32[1]{0}', space=sflag, size = 0x4, scoped, tag = 'scoped memory for tpu_custom_call.1']
    #allocation4 [shape = 's32[1]{0}', space=sflag, size = 0x4, scoped, tag = 'scoped memory for tpu_custom_call.1']
    #allocation5 [shape = 'u8[512]{0}', space=vmem, size = 0x400, scoped, tag = 'output window, operand 0, single buffered']
    #allocation6 [shape = 'u8[4096]{0}', space=vmem, size = 0x1000, scoped, tag = 'output window, operand 1, single buffered']
    #allocation7 [shape = 's32[1]{0}', space=sflag, size = 0x4, scoped, tag = 'scoped memory for tpu_custom_call.1']
    %16 = vsyncpa [#allocation3], 0
    %17 = vsyncpa [#allocation4], 0
    %18 = vsyncpa [#allocation7], 0
    // Predicated region
    $region2: #{tpu_custom_call.1} parent=1 // pred_check
      _
    $region3: #{tpu_custom_call.1} parent=1 // pred_check_branch
      %20 = sbr.rel (0) target = $region5
    $region4: #{tpu_custom_call.1} parent=1 // pred_region
      _
    $region5: #{tpu_custom_call.1} parent=1 // pred_fallthru
      _
    // Predicated region
    $region6: #{tpu_custom_call.1} parent=1 // pred_check
      _
    $region7: #{tpu_custom_call.1} parent=1 // pred_check_branch
      %22 = sbr.rel (0) target = $region9
    $region8: #{tpu_custom_call.1} parent=1 // pred_region
      _
    $region9: #{tpu_custom_call.1} parent=1 // pred_fallthru
      _
    // Predicated region
    $region10: #{tpu_custom_call.1} parent=1 // pred_check
      _
    $region11: #{tpu_custom_call.1} parent=1 // pred_check_branch
      %24 = sbr.rel (0) target = $region13
    $region12: #{tpu_custom_call.1} parent=1 // pred_region
      _
    $region13: #{tpu_custom_call.1} parent=1 // pred_fallthru
      _
    // Predicated region
    $region14: #{tpu_custom_call.1} parent=1 // pred_check
      _
    $region15: #{tpu_custom_call.1} parent=1 // pred_check_branch
      %26 = sbr.rel (0) target = $region17
    $region16: #{tpu_custom_call.1} parent=1 // pred_region
      _
    $region17: #{tpu_custom_call.1} parent=1 // pred_fallthru
      _
    // Predicated region
    $region18: #{tpu_custom_call.1} parent=1 // pred_check
      _
    $region19: #{tpu_custom_call.1} parent=1 // pred_check_branch
      %28 = sbr.rel (0) target = $region21
    $region20: #{tpu_custom_call.1} parent=1 // pred_region
      _
    $region21: #{tpu_custom_call.1} parent=1 // pred_fallthru
      _
    // Predicated region
    $region22: #{tpu_custom_call.1} parent=1 // pred_check
      _
    $region23: #{tpu_custom_call.1} parent=1 // pred_check_branch
      %30 = sbr.rel (0) target = $region25
    $region24: #{tpu_custom_call.1} parent=1 // pred_region
      %s32 = ssub.s32 3200, 3200
      %33 = vsyncadd [#allocation3], %s32
      %s34 = sshll.u32 [#allocation2], 4
      %s35 = int_to_ptr.vmem [resolvable:$true] %s34
      %40 = dma.hbm_to_vmem [thread:$0]  %s5, 3200, %s35, [#allocation3], 128, 128, 8
    $region25: #{tpu_custom_call.1} parent=1 // pred_fallthru
      _
    // Predicated region
    $region26: #{tpu_custom_call.1} parent=1 // pred_check
      _
    $region27: #{tpu_custom_call.1} parent=1 // pred_check_branch
      %42 = sbr.rel (0) target = $region29
    $region28: #{tpu_custom_call.1} parent=1 // pred_region
      _
    $region29: #{tpu_custom_call.1} parent=1 // pred_fallthru
      _
    // Predicated region
    $region30: #{tpu_custom_call.1} parent=1 // pred_check
      _
    $region31: #{tpu_custom_call.1} parent=1 // pred_check_branch
      %44 = sbr.rel (0) target = $region33
    $region32: #{tpu_custom_call.1} parent=1 // pred_region
      _
    $region33: #{tpu_custom_call.1} parent=1 // pred_fallthru
      _
    // Predicated region
    $region34: #{tpu_custom_call.1} parent=1 // pred_check
      _
    $region35: #{tpu_custom_call.1} parent=1 // pred_check_branch
      %46 = sbr.rel (0) target = $region37
    $region36: #{tpu_custom_call.1} parent=1 // pred_region
      _
    $region37: #{tpu_custom_call.1} parent=1 // pred_fallthru
      _
    // Predicated region
    $region38: #{tpu_custom_call.1} parent=1 // pred_check
      _
    $region39: #{tpu_custom_call.1} parent=1 // pred_check_branch
      %48 = sbr.rel (0) target = $region41
    $region40: #{tpu_custom_call.1} parent=1 // pred_region
      %49 = dma.done [#allocation3], 3200
    $region41: #{tpu_custom_call.1} parent=1 // pred_fallthru
      _
    %v50 = vld [vmem:[%s2] sm:$0xff]
    %v51 = vld [vmem:[%s1 + $0x2] sm:$0x1]
    %v52 = vld [vmem:[%s3] sm:$0xff]
    %v53 = vld [vmem:[%s3 + $0x8] sm:$0xff]
    %v54 = vld [vmem:[%s3 + $0x10] sm:$0xff]
    %v55 = vld [vmem:[%s3 + $0x18] sm:$0xff]
    %vm56 = vcmask 261120
    %v58 = vsel %vm56, %v51, 0
    %60 = vmatprep.subr.mxu0 0.0
    %61 = vmatpush1.msra.mxu0 %v52
    %62 = vmatprep.subr.mxu0 0.0
    %63 = vmatpush1.msra.mxu0 %v53
    %64 = vmatprep.subr.mxu0 0.0
    %65 = vmatpush1.msra.mxu0 %v54
    %66 = vmatprep.subr.mxu0 0.0
    %67 = vmatpush1.msra.mxu0 %v55
    %68 = vmatprep.subr.mxu0 0.0
    %69 = vmatpush1.msra.mxu0 0.0
    %70 = vmatprep.subr.mxu0 0.0
    %71 = vmatpush1.msra.mxu0 0.0
    %72 = vmatprep.subr.mxu0 0.0
    %73 = vmatpush1.msra.mxu0 0.0
    %74 = vmatprep.subr.mxu0 0.0
    %75 = vmatpush1.msra.mxu0 0.0
    %76 = vmatprep.subr.mxu0 0.0
    %77 = vmatpush1.msra.mxu0 0.0
    %78 = vmatprep.subr.mxu0 0.0
    %79 = vmatpush1.msra.mxu0 0.0
    %80 = vmatprep.subr.mxu0 0.0
    %81 = vmatpush1.msra.mxu0 0.0
    %82 = vmatprep.subr.mxu0 0.0
    %83 = vmatpush1.msra.mxu0 0.0
    %84 = vmatprep.subr.mxu0 0.0
    %85 = vmatpush1.msra.mxu0 0.0
    %86 = vmatprep.subr.mxu0 0.0
    %87 = vmatpush1.msra.mxu0 0.0
    %88 = vmatprep.subr.mxu0 0.0
    %89 = vmatpush1.msra.mxu0 0.0
    %90 = vmatprep.subr.mxu0 0.0
    %91 = vmatpush1.msra.mxu0 0.0
    %92 = vmatprep.subr.mxu0 0.0
    %93 = vmatpush1.msra.mxu0 0.0
    %94 = vmatprep.subr.mxu0 0.0
    %95 = vmatpush1.msra.mxu0 0.0
    %96 = vmatprep.subr.mxu0 0.0
    %97 = vmatpush1.msra.mxu0 0.0
    %98 = vmatprep.subr.mxu0 0.0
    %99 = vmatpush1.msra.mxu0 0.0
    %100 = vmatprep.subr.mxu0 0.0
    %101 = vmatpush1.msra.mxu0 0.0
    %102 = vmatprep.subr.mxu0 0.0
    %103 = vmatpush1.msra.mxu0 0.0
    %104 = vmatprep.subr.mxu0 0.0
    %105 = vmatpush1.msra.mxu0 0.0
    %106 = vmatprep.subr.mxu0 0.0
    %107 = vmatpush1.msra.mxu0 0.0
    %108 = vmatprep.subr.mxu0 0.0
    %109 = vmatpush1.msra.mxu0 0.0
    %110 = vmatprep.subr.mxu0 0.0
    %111 = vmatpush1.msra.mxu0 0.0
    %112 = vmatprep.subr.mxu0 0.0
    %113 = vmatpush1.msra.mxu0 0.0
    %114 = vmatprep.subr.mxu0 0.0
    %115 = vmatpush1.msra.mxu0 0.0
    %116 = vmatprep.subr.mxu0 0.0
    %117 = vmatpush1.msra.mxu0 0.0
    %118 = vmatprep.subr.mxu0 0.0
    %119 = vmatpush1.msra.mxu0 0.0
    %120 = vmatprep.subr.mxu0 0.0
    %121 = vmatpush1.msra.mxu0 0.0
    %122 = vmatprep.subr.mxu0 0.0
    %123 = vmatpush1.msra.mxu0 0.0
    %124 = vmatprep.mubr.f32.mxu0 0.0
    %125 = vmatmul.mubr.f32.gmra.mrb[0].mxu0 %v58
    %v126 = vpop.f32.mrb[0].mxu0
    %v127 = vadd.f32 0.0, %v126
    %v128 = vpop.f32.mrb[0].mxu0
    %129 = vdwg.mxu0
    %v130 = vld [vmem:[%s3 + $0x20] sm:$0xff]
    %v131 = vld [vmem:[%s3 + $0x28] sm:$0xff]
    %v132 = vld [vmem:[%s3 + $0x30] sm:$0xff]
    %v133 = vld [vmem:[%s3 + $0x38] sm:$0xff]
    %v135 = vsel %vm56, %v50, 0
    %137 = vmatprep.subr.mxu0 0.0
    %138 = vmatpush1.msra.mxu0 %v130
    %139 = vmatprep.subr.mxu0 0.0
    %140 = vmatpush1.msra.mxu0 %v131
    %141 = vmatprep.subr.mxu0 0.0
    %142 = vmatpush1.msra.mxu0 %v132
    %143 = vmatprep.subr.mxu0 0.0
    %144 = vmatpush1.msra.mxu0 %v133
    %145 = vmatprep.subr.mxu0 0.0
    %146 = vmatpush1.msra.mxu0 0.0
    %147 = vmatprep.subr.mxu0 0.0
    %148 = vmatpush1.msra.mxu0 0.0
    %149 = vmatprep.subr.mxu0 0.0
    %150 = vmatpush1.msra.mxu0 0.0
    %151 = vmatprep.subr.mxu0 0.0
    %152 = vmatpush1.msra.mxu0 0.0
    %153 = vmatprep.subr.mxu0 0.0
    %154 = vmatpush1.msra.mxu0 0.0
    %155 = vmatprep.subr.mxu0 0.0
    %156 = vmatpush1.msra.mxu0 0.0
    %157 = vmatprep.subr.mxu0 0.0
    %158 = vmatpush1.msra.mxu0 0.0
    %159 = vmatprep.subr.mxu0 0.0
    %160 = vmatpush1.msra.mxu0 0.0
    %161 = vmatprep.subr.mxu0 0.0
    %162 = vmatpush1.msra.mxu0 0.0
    %163 = vmatprep.subr.mxu0 0.0
    %164 = vmatpush1.msra.mxu0 0.0
    %165 = vmatprep.subr.mxu0 0.0
    %166 = vmatpush1.msra.mxu0 0.0
    %167 = vmatprep.subr.mxu0 0.0
    %168 = vmatpush1.msra.mxu0 0.0
    %169 = vmatprep.subr.mxu0 0.0
    %170 = vmatpush1.msra.mxu0 0.0
    %171 = vmatprep.subr.mxu0 0.0
    %172 = vmatpush1.msra.mxu0 0.0
    %173 = vmatprep.subr.mxu0 0.0
    %174 = vmatpush1.msra.mxu0 0.0
    %175 = vmatprep.subr.mxu0 0.0
    %176 = vmatpush1.msra.mxu0 0.0
    %177 = vmatprep.subr.mxu0 0.0
    %178 = vmatpush1.msra.mxu0 0.0
    %179 = vmatprep.subr.mxu0 0.0
    %180 = vmatpush1.msra.mxu0 0.0
    %181 = vmatprep.subr.mxu0 0.0
    %182 = vmatpush1.msra.mxu0 0.0
    %183 = vmatprep.subr.mxu0 0.0
    %184 = vmatpush1.msra.mxu0 0.0
    %185 = vmatprep.subr.mxu0 0.0
    %186 = vmatpush1.msra.mxu0 0.0
    %187 = vmatprep.subr.mxu0 0.0
    %188 = vmatpush1.msra.mxu0 0.0
    %189 = vmatprep.subr.mxu0 0.0
    %190 = vmatpush1.msra.mxu0 0.0
    %191 = vmatprep.subr.mxu0 0.0
    %192 = vmatpush1.msra.mxu0 0.0
    %193 = vmatprep.subr.mxu0 0.0
    %194 = vmatpush1.msra.mxu0 0.0
    %195 = vmatprep.subr.mxu0 0.0
    %196 = vmatpush1.msra.mxu0 0.0
    %197 = vmatprep.subr.mxu0 0.0
    %198 = vmatpush1.msra.mxu0 0.0
    %199 = vmatprep.subr.mxu0 0.0
    %200 = vmatpush1.msra.mxu0 0.0
    %201 = vmatprep.mubr.f32.mxu0 0.0
    %202 = vmatmul.mubr.f32.gmra.mrb[0].mxu0 %v135
    %v203 = vpop.f32.mrb[0].mxu0
    %v204 = vadd.f32 0.0, %v203
    %v205 = vpop.f32.mrb[0].mxu0
    %206 = vdwg.mxu0
    %v207 = vlaneseq
    %v208 = vshrl.u32 %v207, 7
    %v209 = vsub.s32 0, %v208
    %v210 = vrot.slane %v127, %v209
    %v211 = vadd.f32 %v210, %v204
    %v212 = vld [vmem:[%s4] sm:$0x1]
    %v213 = vlaneseq
    %v214 = vshrl.u32 %v213, 7
    %v215 = vsub.s32 0, %v214
    %v216 = vrot.slane %v212, %v215
    %v217 = vadd.f32 %v211, %v216
    %v218 = vtanh.pop %v217
    %v219 = vld [vmem:[%s4 + $0x1] sm:$0x1]
    %v220 = vlaneseq
    %v221 = vshrl.u32 %v220, 7
    %v222 = vsub.s32 0, %v221
    %v223 = vrot.slane %v219, %v222
    %v224 = vmul.f32 %v218, %v223
    %v225 = vsel %vm56, %v224, 0.0
    %226 = vadd.xlane.f32.xlu0 %v225
    %v227 = vpop.xlane.xlu0 %226
    %v228 = vrot.slane %v227, 4
    %v229 = vmax.f32 %v227, %v228
    %v230 = vrot.slane %v229, 2
    %v231 = vmax.f32 %v229, %v230
    %v232 = vrot.slane %v231, 1
    %v233 = vmax.f32 %v231, %v232
    %v234 = vsub.f32 %v227, %v233
    %v235 = vmul.f32 %v234, 1.442695
    %v236 = vpow.pop %v235
    %v237 = vrot.slane %v236, 4
    %v238 = vadd.f32 %v236, %v237
    %v239 = vrot.slane %v238, 2
    %v240 = vadd.f32 %v238, %v239
    %v241 = vrot.slane %v240, 1
    %v242 = vadd.f32 %v240, %v241
    %v243 = vrcp.pop %v242
    %v244 = vmul.f32 %v236, %v243
    %v245 = vmul.f32 %v244, %v50
    %v246 = vsel %vm56, %v245, 0.0
    %v247 = vrot.slane %v246, 4
    %v248 = vadd.f32 %v246, %v247
    %v249 = vrot.slane %v248, 2
    %v250 = vadd.f32 %v248, %v249
    %v251 = vrot.slane %v250, 1
    %v252 = vadd.f32 %v250, %v251
    %v253 = vld [vmem:[%s0] sm:$0x1]
    %v254 = vld [vmem:[#allocation2] sm:$0xff]
    %v255 = vld [vmem:[#allocation2 + $0x8] sm:$0xff]
    %v256 = vld [vmem:[#allocation2 + $0x10] sm:$0xff]
    %v257 = vld [vmem:[#allocation2 + $0x18] sm:$0xff]
    %v258 = vld [vmem:[#allocation2 + $0x20] sm:$0xff]
    %v260 = vsel %vm56, %v252, 0
    %262 = vmatprep.subr.mxu0 0.0
    %263 = vmatpush1.msra.mxu0 %v255
    %264 = vmatprep.subr.mxu0 0.0
    %265 = vmatpush1.msra.mxu0 %v256
    %266 = vmatprep.subr.mxu0 0.0
    %267 = vmatpush1.msra.mxu0 %v257
    %268 = vmatprep.subr.mxu0 0.0
    %269 = vmatpush1.msra.mxu0 %v258
    %270 = vmatprep.subr.mxu0 0.0
    %271 = vmatpush1.msra.mxu0 0.0
    %272 = vmatprep.subr.mxu0 0.0
    %273 = vmatpush1.msra.mxu0 0.0
    %274 = vmatprep.subr.mxu0 0.0
    %275 = vmatpush1.msra.mxu0 0.0
    %276 = vmatprep.subr.mxu0 0.0
    %277 = vmatpush1.msra.mxu0 0.0
    %278 = vmatprep.subr.mxu0 0.0
    %279 = vmatpush1.msra.mxu0 0.0
    %280 = vmatprep.subr.mxu0 0.0
    %281 = vmatpush1.msra.mxu0 0.0
    %282 = vmatprep.subr.mxu0 0.0
    %283 = vmatpush1.msra.mxu0 0.0
    %284 = vmatprep.subr.mxu0 0.0
    %285 = vmatpush1.msra.mxu0 0.0
    %286 = vmatprep.subr.mxu0 0.0
    %287 = vmatpush1.msra.mxu0 0.0
    %288 = vmatprep.subr.mxu0 0.0
    %289 = vmatpush1.msra.mxu0 0.0
    %290 = vmatprep.subr.mxu0 0.0
    %291 = vmatpush1.msra.mxu0 0.0
    %292 = vmatprep.subr.mxu0 0.0
    %293 = vmatpush1.msra.mxu0 0.0
    %294 = vmatprep.subr.mxu0 0.0
    %295 = vmatpush1.msra.mxu0 0.0
    %296 = vmatprep.subr.mxu0 0.0
    %297 = vmatpush1.msra.mxu0 0.0
    %298 = vmatprep.subr.mxu0 0.0
    %299 = vmatpush1.msra.mxu0 0.0
    %300 = vmatprep.subr.mxu0 0.0
    %301 = vmatpush1.msra.mxu0 0.0
    %302 = vmatprep.subr.mxu0 0.0
    %303 = vmatpush1.msra.mxu0 0.0
    %304 = vmatprep.subr.mxu0 0.0
    %305 = vmatpush1.msra.mxu0 0.0
    %306 = vmatprep.subr.mxu0 0.0
    %307 = vmatpush1.msra.mxu0 0.0
    %308 = vmatprep.subr.mxu0 0.0
    %309 = vmatpush1.msra.mxu0 0.0
    %310 = vmatprep.subr.mxu0 0.0
    %311 = vmatpush1.msra.mxu0 0.0
    %312 = vmatprep.subr.mxu0 0.0
    %313 = vmatpush1.msra.mxu0 0.0
    %314 = vmatprep.subr.mxu0 0.0
    %315 = vmatpush1.msra.mxu0 0.0
    %316 = vmatprep.subr.mxu0 0.0
    %317 = vmatpush1.msra.mxu0 0.0
    %318 = vmatprep.subr.mxu0 0.0
    %319 = vmatpush1.msra.mxu0 0.0
    %320 = vmatprep.subr.mxu0 0.0
    %321 = vmatpush1.msra.mxu0 0.0
    %322 = vmatprep.subr.mxu0 0.0
    %323 = vmatpush1.msra.mxu0 0.0
    %324 = vmatprep.subr.mxu0 0.0
    %325 = vmatpush1.msra.mxu0 0.0
    %326 = vmatprep.mubr.f32.mxu0 0.0
    %327 = vmatmul.mubr.f32.gmra.mrb[0].mxu0 %v260
    %v328 = vpop.f32.mrb[0].mxu0
    %v329 = vadd.f32 0.0, %v328
    %v330 = vpop.f32.mrb[0].mxu0
    %331 = vdwg.mxu0
    %vm332 = vcmask 64512
    %v334 = vsel %vm332, %v253, 0
    %336 = vmatprep.subr.mxu0 0.0
    %337 = vmatpush1.msra.mxu0 %v254
    %338 = vmatprep.subr.mxu0 0.0
    %339 = vmatpush1.msra.mxu0 0.0
    %340 = vmatprep.subr.mxu0 0.0
    %341 = vmatpush1.msra.mxu0 0.0
    %342 = vmatprep.subr.mxu0 0.0
    %343 = vmatpush1.msra.mxu0 0.0
    %344 = vmatprep.subr.mxu0 0.0
    %345 = vmatpush1.msra.mxu0 0.0
    %346 = vmatprep.subr.mxu0 0.0
    %347 = vmatpush1.msra.mxu0 0.0
    %348 = vmatprep.subr.mxu0 0.0
    %349 = vmatpush1.msra.mxu0 0.0
    %350 = vmatprep.subr.mxu0 0.0
    %351 = vmatpush1.msra.mxu0 0.0
    %352 = vmatprep.subr.mxu0 0.0
    %353 = vmatpush1.msra.mxu0 0.0
    %354 = vmatprep.subr.mxu0 0.0
    %355 = vmatpush1.msra.mxu0 0.0
    %356 = vmatprep.subr.mxu0 0.0
    %357 = vmatpush1.msra.mxu0 0.0
    %358 = vmatprep.subr.mxu0 0.0
    %359 = vmatpush1.msra.mxu0 0.0
    %360 = vmatprep.subr.mxu0 0.0
    %361 = vmatpush1.msra.mxu0 0.0
    %362 = vmatprep.subr.mxu0 0.0
    %363 = vmatpush1.msra.mxu0 0.0
    %364 = vmatprep.subr.mxu0 0.0
    %365 = vmatpush1.msra.mxu0 0.0
    %366 = vmatprep.subr.mxu0 0.0
    %367 = vmatpush1.msra.mxu0 0.0
    %368 = vmatprep.subr.mxu0 0.0
    %369 = vmatpush1.msra.mxu0 0.0
    %370 = vmatprep.subr.mxu0 0.0
    %371 = vmatpush1.msra.mxu0 0.0
    %372 = vmatprep.subr.mxu0 0.0
    %373 = vmatpush1.msra.mxu0 0.0
    %374 = vmatprep.subr.mxu0 0.0
    %375 = vmatpush1.msra.mxu0 0.0
    %376 = vmatprep.subr.mxu0 0.0
    %377 = vmatpush1.msra.mxu0 0.0
    %378 = vmatprep.subr.mxu0 0.0
    %379 = vmatpush1.msra.mxu0 0.0
    %380 = vmatprep.subr.mxu0 0.0
    %381 = vmatpush1.msra.mxu0 0.0
    %382 = vmatprep.subr.mxu0 0.0
    %383 = vmatpush1.msra.mxu0 0.0
    %384 = vmatprep.subr.mxu0 0.0
    %385 = vmatpush1.msra.mxu0 0.0
    %386 = vmatprep.subr.mxu0 0.0
    %387 = vmatpush1.msra.mxu0 0.0
    %388 = vmatprep.subr.mxu0 0.0
    %389 = vmatpush1.msra.mxu0 0.0
    %390 = vmatprep.subr.mxu0 0.0
    %391 = vmatpush1.msra.mxu0 0.0
    %392 = vmatprep.subr.mxu0 0.0
    %393 = vmatpush1.msra.mxu0 0.0
    %394 = vmatprep.subr.mxu0 0.0
    %395 = vmatpush1.msra.mxu0 0.0
    %396 = vmatprep.subr.mxu0 0.0
    %397 = vmatpush1.msra.mxu0 0.0
    %398 = vmatprep.subr.mxu0 0.0
    %399 = vmatpush1.msra.mxu0 0.0
    %400 = vmatprep.mubr.f32.mxu0 0.0
    %401 = vmatmul.mubr.f32.gmra.mrb[0].mxu0 %v334
    %v402 = vpop.f32.mrb[0].mxu0
    %v403 = vadd.f32 %v329, %v402
    %v404 = vpop.f32.mrb[0].mxu0
    %405 = vdwg.mxu0
    %v406 = vld [vmem:[%s1] sm:$0x1]
    %v407 = vld [vmem:[#allocation2 + $0x28] sm:$0xff]
    %v408 = vld [vmem:[#allocation2 + $0x30] sm:$0xff]
    %v409 = vld [vmem:[#allocation2 + $0x38] sm:$0xff]
    %v410 = vld [vmem:[#allocation2 + $0x40] sm:$0xff]
    %v412 = vsel %vm56, %v406, 0
    %414 = vmatprep.subr.mxu0 0.0
    %415 = vmatpush1.msra.mxu0 %v407
    %416 = vmatprep.subr.mxu0 0.0
    %417 = vmatpush1.msra.mxu0 %v408
    %418 = vmatprep.subr.mxu0 0.0
    %419 = vmatpush1.msra.mxu0 %v409
    %420 = vmatprep.subr.mxu0 0.0
    %421 = vmatpush1.msra.mxu0 %v410
    %422 = vmatprep.subr.mxu0 0.0
    %423 = vmatpush1.msra.mxu0 0.0
    %424 = vmatprep.subr.mxu0 0.0
    %425 = vmatpush1.msra.mxu0 0.0
    %426 = vmatprep.subr.mxu0 0.0
    %427 = vmatpush1.msra.mxu0 0.0
    %428 = vmatprep.subr.mxu0 0.0
    %429 = vmatpush1.msra.mxu0 0.0
    %430 = vmatprep.subr.mxu0 0.0
    %431 = vmatpush1.msra.mxu0 0.0
    %432 = vmatprep.subr.mxu0 0.0
    %433 = vmatpush1.msra.mxu0 0.0
    %434 = vmatprep.subr.mxu0 0.0
    %435 = vmatpush1.msra.mxu0 0.0
    %436 = vmatprep.subr.mxu0 0.0
    %437 = vmatpush1.msra.mxu0 0.0
    %438 = vmatprep.subr.mxu0 0.0
    %439 = vmatpush1.msra.mxu0 0.0
    %440 = vmatprep.subr.mxu0 0.0
    %441 = vmatpush1.msra.mxu0 0.0
    %442 = vmatprep.subr.mxu0 0.0
    %443 = vmatpush1.msra.mxu0 0.0
    %444 = vmatprep.subr.mxu0 0.0
    %445 = vmatpush1.msra.mxu0 0.0
    %446 = vmatprep.subr.mxu0 0.0
    %447 = vmatpush1.msra.mxu0 0.0
    %448 = vmatprep.subr.mxu0 0.0
    %449 = vmatpush1.msra.mxu0 0.0
    %450 = vmatprep.subr.mxu0 0.0
    %451 = vmatpush1.msra.mxu0 0.0
    %452 = vmatprep.subr.mxu0 0.0
    %453 = vmatpush1.msra.mxu0 0.0
    %454 = vmatprep.subr.mxu0 0.0
    %455 = vmatpush1.msra.mxu0 0.0
    %456 = vmatprep.subr.mxu0 0.0
    %457 = vmatpush1.msra.mxu0 0.0
    %458 = vmatprep.subr.mxu0 0.0
    %459 = vmatpush1.msra.mxu0 0.0
    %460 = vmatprep.subr.mxu0 0.0
    %461 = vmatpush1.msra.mxu0 0.0
    %462 = vmatprep.subr.mxu0 0.0
    %463 = vmatpush1.msra.mxu0 0.0
    %464 = vmatprep.subr.mxu0 0.0
    %465 = vmatpush1.msra.mxu0 0.0
    %466 = vmatprep.subr.mxu0 0.0
    %467 = vmatpush1.msra.mxu0 0.0
    %468 = vmatprep.subr.mxu0 0.0
    %469 = vmatpush1.msra.mxu0 0.0
    %470 = vmatprep.subr.mxu0 0.0
    %471 = vmatpush1.msra.mxu0 0.0
    %472 = vmatprep.subr.mxu0 0.0
    %473 = vmatpush1.msra.mxu0 0.0
    %474 = vmatprep.subr.mxu0 0.0
    %475 = vmatpush1.msra.mxu0 0.0
    %476 = vmatprep.subr.mxu0 0.0
    %477 = vmatpush1.msra.mxu0 0.0
    %478 = vmatprep.mubr.f32.mxu0 0.0
    %479 = vmatmul.mubr.f32.gmra.mrb[0].mxu0 %v412
    %v480 = vpop.f32.mrb[0].mxu0
    %v481 = vadd.f32 0.0, %v480
    %v482 = vpop.f32.mrb[0].mxu0
    %483 = vdwg.mxu0
    %v484 = vadd.f32 %v403, %v481
    %v485 = vld [vmem:[%s6] sm:$0x1]
    %v486 = vadd.f32 %v484, %v485
    %v487 = vld [vmem:[%s1 + $0x3] sm:$0x1]
    %v488 = vxor.u32 %v486, 2147483648
    %v489 = vmul.f32 %v488, 1.442695
    %v490 = vpow.pop %v489
    %v491 = vadd.f32 %v490, 1.0
    %v492 = vrcp.pop %v491
    %v493 = vmul.f32 1.0, %v492
    %v494 = vtanh.pop %v486
    %496 = vrot.lane.b32.xlu0 %v487, 32
    %v497 = vpop.permute.xlu0 %496
    %v499 = vmul.f32 %v493, %v497
    %501 = vrot.lane.b32.xlu0 %v494, 64
    %v502 = vpop.permute.xlu0 %501
    %v504 = vmul.f32 %v493, %v502
    %506 = vrot.lane.b32.xlu0 %v504, 32
    %v507 = vpop.permute.xlu0 %506
    %v509 = vadd.f32 %v499, %v507
    %v510 = vtanh.pop %v509
    %512 = vrot.lane.b32.xlu0 %v510, 64
    %v513 = vpop.permute.xlu0 %512
    %v515 = vmul.f32 %v493, %v513
    %v516 = vld [vmem:[#allocation2 + $0x48] sm:$0xff]
    %v517 = vld [vmem:[#allocation2 + $0x50] sm:$0xff]
    %v518 = vld [vmem:[#allocation2 + $0x58] sm:$0xff]
    %v519 = vld [vmem:[#allocation2 + $0x60] sm:$0xff]
    %v520 = vld [vmem:[%s1 + $0x1] sm:$0x1]
    %v521 = vld [vmem:[#allocation2 + $0x68] sm:$0xff]
    %v522 = vld [vmem:[#allocation2 + $0x70] sm:$0xff]
    %v523 = vld [vmem:[#allocation2 + $0x78] sm:$0xff]
    %v524 = vld [vmem:[#allocation2 + $0x80] sm:$0xff]
    %v526 = vsel %vm56, %v520, 0
    %528 = vmatprep.subr.mxu0 0.0
    %529 = vmatpush1.msra.mxu0 %v521
    %530 = vmatprep.subr.mxu0 0.0
    %531 = vmatpush1.msra.mxu0 %v522
    %532 = vmatprep.subr.mxu0 0.0
    %533 = vmatpush1.msra.mxu0 %v523
    %534 = vmatprep.subr.mxu0 0.0
    %535 = vmatpush1.msra.mxu0 %v524
    %536 = vmatprep.subr.mxu0 0.0
    %537 = vmatpush1.msra.mxu0 0.0
    %538 = vmatprep.subr.mxu0 0.0
    %539 = vmatpush1.msra.mxu0 0.0
    %540 = vmatprep.subr.mxu0 0.0
    %541 = vmatpush1.msra.mxu0 0.0
    %542 = vmatprep.subr.mxu0 0.0
    %543 = vmatpush1.msra.mxu0 0.0
    %544 = vmatprep.subr.mxu0 0.0
    %545 = vmatpush1.msra.mxu0 0.0
    %546 = vmatprep.subr.mxu0 0.0
    %547 = vmatpush1.msra.mxu0 0.0
    %548 = vmatprep.subr.mxu0 0.0
    %549 = vmatpush1.msra.mxu0 0.0
    %550 = vmatprep.subr.mxu0 0.0
    %551 = vmatpush1.msra.mxu0 0.0
    %552 = vmatprep.subr.mxu0 0.0
    %553 = vmatpush1.msra.mxu0 0.0
    %554 = vmatprep.subr.mxu0 0.0
    %555 = vmatpush1.msra.mxu0 0.0
    %556 = vmatprep.subr.mxu0 0.0
    %557 = vmatpush1.msra.mxu0 0.0
    %558 = vmatprep.subr.mxu0 0.0
    %559 = vmatpush1.msra.mxu0 0.0
    %560 = vmatprep.subr.mxu0 0.0
    %561 = vmatpush1.msra.mxu0 0.0
    %562 = vmatprep.subr.mxu0 0.0
    %563 = vmatpush1.msra.mxu0 0.0
    %564 = vmatprep.subr.mxu0 0.0
    %565 = vmatpush1.msra.mxu0 0.0
    %566 = vmatprep.subr.mxu0 0.0
    %567 = vmatpush1.msra.mxu0 0.0
    %568 = vmatprep.subr.mxu0 0.0
    %569 = vmatpush1.msra.mxu0 0.0
    %570 = vmatprep.subr.mxu0 0.0
    %571 = vmatpush1.msra.mxu0 0.0
    %572 = vmatprep.subr.mxu0 0.0
    %573 = vmatpush1.msra.mxu0 0.0
    %574 = vmatprep.subr.mxu0 0.0
    %575 = vmatpush1.msra.mxu0 0.0
    %576 = vmatprep.subr.mxu0 0.0
    %577 = vmatpush1.msra.mxu0 0.0
    %578 = vmatprep.subr.mxu0 0.0
    %579 = vmatpush1.msra.mxu0 0.0
    %580 = vmatprep.subr.mxu0 0.0
    %581 = vmatpush1.msra.mxu0 0.0
    %582 = vmatprep.subr.mxu0 0.0
    %583 = vmatpush1.msra.mxu0 0.0
    %584 = vmatprep.subr.mxu0 0.0
    %585 = vmatpush1.msra.mxu0 0.0
    %586 = vmatprep.subr.mxu0 0.0
    %587 = vmatpush1.msra.mxu0 0.0
    %588 = vmatprep.subr.mxu0 0.0
    %589 = vmatpush1.msra.mxu0 0.0
    %590 = vmatprep.subr.mxu0 0.0
    %591 = vmatpush1.msra.mxu0 0.0
    %592 = vmatprep.mubr.f32.mxu0 0.0
    %593 = vmatmul.mubr.f32.gmra.mrb[0].mxu0 %v526
    %v594 = vpop.f32.mrb[0].mxu0
    %v595 = vadd.f32 0.0, %v594
    %v596 = vpop.f32.mrb[0].mxu0
    %597 = vdwg.mxu0
    %599 = vrot.lane.b32.xlu0 %v515, 32
    %v600 = vpop.permute.xlu0 %599
    %v601 = vsel %vm56, %v600, 0
    %603 = vmatprep.subr.mxu0 0.0
    %604 = vmatpush1.msra.mxu0 %v516
    %605 = vmatprep.subr.mxu0 0.0
    %606 = vmatpush1.msra.mxu0 %v517
    %607 = vmatprep.subr.mxu0 0.0
    %608 = vmatpush1.msra.mxu0 %v518
    %609 = vmatprep.subr.mxu0 0.0
    %610 = vmatpush1.msra.mxu0 %v519
    %611 = vmatprep.subr.mxu0 0.0
    %612 = vmatpush1.msra.mxu0 0.0
    %613 = vmatprep.subr.mxu0 0.0
    %614 = vmatpush1.msra.mxu0 0.0
    %615 = vmatprep.subr.mxu0 0.0
    %616 = vmatpush1.msra.mxu0 0.0
    %617 = vmatprep.subr.mxu0 0.0
    %618 = vmatpush1.msra.mxu0 0.0
    %619 = vmatprep.subr.mxu0 0.0
    %620 = vmatpush1.msra.mxu0 0.0
    %621 = vmatprep.subr.mxu0 0.0
    %622 = vmatpush1.msra.mxu0 0.0
    %623 = vmatprep.subr.mxu0 0.0
    %624 = vmatpush1.msra.mxu0 0.0
    %625 = vmatprep.subr.mxu0 0.0
    %626 = vmatpush1.msra.mxu0 0.0
    %627 = vmatprep.subr.mxu0 0.0
    %628 = vmatpush1.msra.mxu0 0.0
    %629 = vmatprep.subr.mxu0 0.0
    %630 = vmatpush1.msra.mxu0 0.0
    %631 = vmatprep.subr.mxu0 0.0
    %632 = vmatpush1.msra.mxu0 0.0
    %633 = vmatprep.subr.mxu0 0.0
    %634 = vmatpush1.msra.mxu0 0.0
    %635 = vmatprep.subr.mxu0 0.0
    %636 = vmatpush1.msra.mxu0 0.0
    %637 = vmatprep.subr.mxu0 0.0
    %638 = vmatpush1.msra.mxu0 0.0
    %639 = vmatprep.subr.mxu0 0.0
    %640 = vmatpush1.msra.mxu0 0.0
    %641 = vmatprep.subr.mxu0 0.0
    %642 = vmatpush1.msra.mxu0 0.0
    %643 = vmatprep.subr.mxu0 0.0
    %644 = vmatpush1.msra.mxu0 0.0
    %645 = vmatprep.subr.mxu0 0.0
    %646 = vmatpush1.msra.mxu0 0.0
    %647 = vmatprep.subr.mxu0 0.0
    %648 = vmatpush1.msra.mxu0 0.0
    %649 = vmatprep.subr.mxu0 0.0
    %650 = vmatpush1.msra.mxu0 0.0
    %651 = vmatprep.subr.mxu0 0.0
    %652 = vmatpush1.msra.mxu0 0.0
    %653 = vmatprep.subr.mxu0 0.0
    %654 = vmatpush1.msra.mxu0 0.0
    %655 = vmatprep.subr.mxu0 0.0
    %656 = vmatpush1.msra.mxu0 0.0
    %657 = vmatprep.subr.mxu0 0.0
    %658 = vmatpush1.msra.mxu0 0.0
    %659 = vmatprep.subr.mxu0 0.0
    %660 = vmatpush1.msra.mxu0 0.0
    %661 = vmatprep.subr.mxu0 0.0
    %662 = vmatpush1.msra.mxu0 0.0
    %663 = vmatprep.subr.mxu0 0.0
    %664 = vmatpush1.msra.mxu0 0.0
    %665 = vmatprep.subr.mxu0 0.0
    %666 = vmatpush1.msra.mxu0 0.0
    %667 = vmatprep.mubr.f32.mxu0 0.0
    %668 = vmatmul.mubr.f32.gmra.mrb[0].mxu0 %v601
    %v669 = vpop.f32.mrb[0].mxu0
    %v670 = vadd.f32 %v595, %v669
    %v671 = vpop.f32.mrb[0].mxu0
    %672 = vdwg.mxu0
    %v673 = vld [vmem:[%s6 + $0x1] sm:$0x1]
    %v674 = vadd.f32 %v670, %v673
    %v675 = vld [vmem:[%s1 + $0x4] sm:$0x1]
    %v676 = vxor.u32 %v674, 2147483648
    %v677 = vmul.f32 %v676, 1.442695
    %v678 = vpow.pop %v677
    %v679 = vadd.f32 %v678, 1.0
    %v680 = vrcp.pop %v679
    %v681 = vmul.f32 1.0, %v680
    %v682 = vtanh.pop %v674
    %684 = vrot.lane.b32.xlu0 %v675, 32
    %v685 = vpop.permute.xlu0 %684
    %v687 = vmul.f32 %v681, %v685
    %689 = vrot.lane.b32.xlu0 %v682, 64
    %v690 = vpop.permute.xlu0 %689
    %v692 = vmul.f32 %v681, %v690
    %694 = vrot.lane.b32.xlu0 %v692, 32
    %v695 = vpop.permute.xlu0 %694
    %v697 = vadd.f32 %v687, %v695
    %v698 = vtanh.pop %v697
    %700 = vrot.lane.b32.xlu0 %v698, 64
    %v701 = vpop.permute.xlu0 %700
    %v703 = vmul.f32 %v681, %v701
    %v704 = vld [vmem:[#allocation2 + $0x88] sm:$0xff]
    %v705 = vld [vmem:[#allocation2 + $0x90] sm:$0xff]
    %v706 = vld [vmem:[#allocation2 + $0x98] sm:$0xff]
    %v707 = vld [vmem:[#allocation2 + $0xa0] sm:$0xff]
    %v708 = vld [vmem:[#allocation2 + $0xa8] sm:$0xff]
    %v709 = vld [vmem:[#allocation2 + $0xb0] sm:$0xff]
    %v710 = vld [vmem:[#allocation2 + $0xb8] sm:$0xff]
    %v711 = vld [vmem:[#allocation2 + $0xc0] sm:$0xff]
    %712 = vmatprep.subr.mxu0 0.0
    %713 = vmatpush1.msra.mxu0 %v708
    %714 = vmatprep.subr.mxu0 0.0
    %715 = vmatpush1.msra.mxu0 %v709
    %716 = vmatprep.subr.mxu0 0.0
    %717 = vmatpush1.msra.mxu0 %v710
    %718 = vmatprep.subr.mxu0 0.0
    %719 = vmatpush1.msra.mxu0 %v711
    %720 = vmatprep.subr.mxu0 0.0
    %721 = vmatpush1.msra.mxu0 0.0
    %722 = vmatprep.subr.mxu0 0.0
    %723 = vmatpush1.msra.mxu0 0.0
    %724 = vmatprep.subr.mxu0 0.0
    %725 = vmatpush1.msra.mxu0 0.0
    %726 = vmatprep.subr.mxu0 0.0
    %727 = vmatpush1.msra.mxu0 0.0
    %728 = vmatprep.subr.mxu0 0.0
    %729 = vmatpush1.msra.mxu0 0.0
    %730 = vmatprep.subr.mxu0 0.0
    %731 = vmatpush1.msra.mxu0 0.0
    %732 = vmatprep.subr.mxu0 0.0
    %733 = vmatpush1.msra.mxu0 0.0
    %734 = vmatprep.subr.mxu0 0.0
    %735 = vmatpush1.msra.mxu0 0.0
    %736 = vmatprep.subr.mxu0 0.0
    %737 = vmatpush1.msra.mxu0 0.0
    %738 = vmatprep.subr.mxu0 0.0
    %739 = vmatpush1.msra.mxu0 0.0
    %740 = vmatprep.subr.mxu0 0.0
    %741 = vmatpush1.msra.mxu0 0.0
    %742 = vmatprep.subr.mxu0 0.0
    %743 = vmatpush1.msra.mxu0 0.0
    %744 = vmatprep.subr.mxu0 0.0
    %745 = vmatpush1.msra.mxu0 0.0
    %746 = vmatprep.subr.mxu0 0.0
    %747 = vmatpush1.msra.mxu0 0.0
    %748 = vmatprep.subr.mxu0 0.0
    %749 = vmatpush1.msra.mxu0 0.0
    %750 = vmatprep.subr.mxu0 0.0
    %751 = vmatpush1.msra.mxu0 0.0
    %752 = vmatprep.subr.mxu0 0.0
    %753 = vmatpush1.msra.mxu0 0.0
    %754 = vmatprep.subr.mxu0 0.0
    %755 = vmatpush1.msra.mxu0 0.0
    %756 = vmatprep.subr.mxu0 0.0
    %757 = vmatpush1.msra.mxu0 0.0
    %758 = vmatprep.subr.mxu0 0.0
    %759 = vmatpush1.msra.mxu0 0.0
    %760 = vmatprep.subr.mxu0 0.0
    %761 = vmatpush1.msra.mxu0 0.0
    %762 = vmatprep.subr.mxu0 0.0
    %763 = vmatpush1.msra.mxu0 0.0
    %764 = vmatprep.subr.mxu0 0.0
    %765 = vmatpush1.msra.mxu0 0.0
    %766 = vmatprep.subr.mxu0 0.0
    %767 = vmatpush1.msra.mxu0 0.0
    %768 = vmatprep.subr.mxu0 0.0
    %769 = vmatpush1.msra.mxu0 0.0
    %770 = vmatprep.subr.mxu0 0.0
    %771 = vmatpush1.msra.mxu0 0.0
    %772 = vmatprep.subr.mxu0 0.0
    %773 = vmatpush1.msra.mxu0 0.0
    %774 = vmatprep.subr.mxu0 0.0
    %775 = vmatpush1.msra.mxu0 0.0
    %776 = vmatprep.mubr.f32.mxu0 0.0
    %777 = vmatmul.mubr.f32.gmra.mrb[0].mxu0 %v58
    %v778 = vpop.f32.mrb[0].mxu0
    %v779 = vadd.f32 0.0, %v778
    %v780 = vpop.f32.mrb[0].mxu0
    %781 = vdwg.mxu0
    %783 = vrot.lane.b32.xlu0 %v703, 32
    %v784 = vpop.permute.xlu0 %783
    %v785 = vsel %vm56, %v784, 0
    %787 = vmatprep.subr.mxu0 0.0
    %788 = vmatpush1.msra.mxu0 %v704
    %789 = vmatprep.subr.mxu0 0.0
    %790 = vmatpush1.msra.mxu0 %v705
    %791 = vmatprep.subr.mxu0 0.0
    %792 = vmatpush1.msra.mxu0 %v706
    %793 = vmatprep.subr.mxu0 0.0
    %794 = vmatpush1.msra.mxu0 %v707
    %795 = vmatprep.subr.mxu0 0.0
    %796 = vmatpush1.msra.mxu0 0.0
    %797 = vmatprep.subr.mxu0 0.0
    %798 = vmatpush1.msra.mxu0 0.0
    %799 = vmatprep.subr.mxu0 0.0
    %800 = vmatpush1.msra.mxu0 0.0
    %801 = vmatprep.subr.mxu0 0.0
    %802 = vmatpush1.msra.mxu0 0.0
    %803 = vmatprep.subr.mxu0 0.0
    %804 = vmatpush1.msra.mxu0 0.0
    %805 = vmatprep.subr.mxu0 0.0
    %806 = vmatpush1.msra.mxu0 0.0
    %807 = vmatprep.subr.mxu0 0.0
    %808 = vmatpush1.msra.mxu0 0.0
    %809 = vmatprep.subr.mxu0 0.0
    %810 = vmatpush1.msra.mxu0 0.0
    %811 = vmatprep.subr.mxu0 0.0
    %812 = vmatpush1.msra.mxu0 0.0
    %813 = vmatprep.subr.mxu0 0.0
    %814 = vmatpush1.msra.mxu0 0.0
    %815 = vmatprep.subr.mxu0 0.0
    %816 = vmatpush1.msra.mxu0 0.0
    %817 = vmatprep.subr.mxu0 0.0
    %818 = vmatpush1.msra.mxu0 0.0
    %819 = vmatprep.subr.mxu0 0.0
    %820 = vmatpush1.msra.mxu0 0.0
    %821 = vmatprep.subr.mxu0 0.0
    %822 = vmatpush1.msra.mxu0 0.0
    %823 = vmatprep.subr.mxu0 0.0
    %824 = vmatpush1.msra.mxu0 0.0
    %825 = vmatprep.subr.mxu0 0.0
    %826 = vmatpush1.msra.mxu0 0.0
    %827 = vmatprep.subr.mxu0 0.0
    %828 = vmatpush1.msra.mxu0 0.0
    %829 = vmatprep.subr.mxu0 0.0
    %830 = vmatpush1.msra.mxu0 0.0
    %831 = vmatprep.subr.mxu0 0.0
    %832 = vmatpush1.msra.mxu0 0.0
    %833 = vmatprep.subr.mxu0 0.0
    %834 = vmatpush1.msra.mxu0 0.0
    %835 = vmatprep.subr.mxu0 0.0
    %836 = vmatpush1.msra.mxu0 0.0
    %837 = vmatprep.subr.mxu0 0.0
    %838 = vmatpush1.msra.mxu0 0.0
    %839 = vmatprep.subr.mxu0 0.0
    %840 = vmatpush1.msra.mxu0 0.0
    %841 = vmatprep.subr.mxu0 0.0
    %842 = vmatpush1.msra.mxu0 0.0
    %843 = vmatprep.subr.mxu0 0.0
    %844 = vmatpush1.msra.mxu0 0.0
    %845 = vmatprep.subr.mxu0 0.0
    %846 = vmatpush1.msra.mxu0 0.0
    %847 = vmatprep.subr.mxu0 0.0
    %848 = vmatpush1.msra.mxu0 0.0
    %849 = vmatprep.subr.mxu0 0.0
    %850 = vmatpush1.msra.mxu0 0.0
    %851 = vmatprep.mubr.f32.mxu0 0.0
    %852 = vmatmul.mubr.f32.gmra.mrb[0].mxu0 %v785
    %v853 = vpop.f32.mrb[0].mxu0
    %v854 = vadd.f32 %v779, %v853
    %v855 = vpop.f32.mrb[0].mxu0
    %856 = vdwg.mxu0
    %v857 = vld [vmem:[%s6 + $0x2] sm:$0x1]
    %v858 = vadd.f32 %v854, %v857
    %v859 = vld [vmem:[%s1 + $0x5] sm:$0x1]
    %v860 = vxor.u32 %v858, 2147483648
    %v861 = vmul.f32 %v860, 1.442695
    %v862 = vpow.pop %v861
    %v863 = vadd.f32 %v862, 1.0
    %v864 = vrcp.pop %v863
    %v865 = vmul.f32 1.0, %v864
    %v866 = vtanh.pop %v858
    %868 = vrot.lane.b32.xlu0 %v859, 32
    %v869 = vpop.permute.xlu0 %868
    %v871 = vmul.f32 %v865, %v869
    %873 = vrot.lane.b32.xlu0 %v866, 64
    %v874 = vpop.permute.xlu0 %873
    %v876 = vmul.f32 %v865, %v874
    %878 = vrot.lane.b32.xlu0 %v876, 32
    %v879 = vpop.permute.xlu0 %878
    %v881 = vadd.f32 %v871, %v879
    %v882 = vtanh.pop %v881
    %884 = vrot.lane.b32.xlu0 %v882, 64
    %v885 = vpop.permute.xlu0 %884
    %v887 = vmul.f32 %v865, %v885
    %v888 = vrot.slane %v703, 7
    %v891 = vrot.slane %v887, 6
    %v894 = vrot.slane %v509, 5
    %895 = vrot.lane.b32.xlu0 %v894, 64
    %v896 = vpop.permute.xlu0 %895
    %v899 = vrot.slane %v697, 4
    %900 = vrot.lane.b32.xlu0 %v899, 64
    %v901 = vpop.permute.xlu0 %900
    %v904 = vrot.slane %v881, 3
    %905 = vrot.lane.b32.xlu0 %v904, 64
    %v906 = vpop.permute.xlu0 %905
    %vm908 = vcmask 1040384
    %v909 = vsel %vm908, %v515, %v888
    %vm910 = vcmask 1041408
    %v911 = vsel %vm910, %v909, %v891
    %vm912 = vcmask 1042432
    %v913 = vsel %vm912, %v911, %v896
    %vm914 = vcmask 1043456
    %v915 = vsel %vm914, %v913, %v901
    %vm916 = vcmask 1044480
    %v917 = vsel %vm916, %v915, %v906
    %919 = vrot.lane.b32.xlu0 %v917, 32
    %v920 = vpop.permute.xlu0 %919
    %vm922 = vcmask 259072
    %923 = vst.msk [vmem:[#allocation6] sm:$0x3f] %vm922, %v920
    %v924 = vld [vmem:[%s7] sm:$0xff]
    %v925 = vld [vmem:[%s7 + $0x8] sm:$0xff]
    %v926 = vld [vmem:[%s7 + $0x10] sm:$0xff]
    %v927 = vld [vmem:[%s7 + $0x18] sm:$0xff]
    %v928 = vld [vmem:[%s7 + $0x20] sm:$0xff]
    %v929 = vld [vmem:[%s7 + $0x28] sm:$0xff]
    %v930 = vld [vmem:[%s7 + $0x30] sm:$0xff]
    %v931 = vld [vmem:[%s7 + $0x38] sm:$0xff]
    %932 = vmatprep.subr.mxu0 0.0
    %933 = vmatpush1.msra.mxu0 %v928
    %934 = vmatprep.subr.mxu0 0.0
    %935 = vmatpush1.msra.mxu0 %v929
    %936 = vmatprep.subr.mxu0 0.0
    %937 = vmatpush1.msra.mxu0 %v930
    %938 = vmatprep.subr.mxu0 0.0
    %939 = vmatpush1.msra.mxu0 %v931
    %940 = vmatprep.subr.mxu0 0.0
    %941 = vmatpush1.msra.mxu0 0.0
    %942 = vmatprep.subr.mxu0 0.0
    %943 = vmatpush1.msra.mxu0 0.0
    %944 = vmatprep.subr.mxu0 0.0
    %945 = vmatpush1.msra.mxu0 0.0
    %946 = vmatprep.subr.mxu0 0.0
    %947 = vmatpush1.msra.mxu0 0.0
    %948 = vmatprep.subr.mxu0 0.0
    %949 = vmatpush1.msra.mxu0 0.0
    %950 = vmatprep.subr.mxu0 0.0
    %951 = vmatpush1.msra.mxu0 0.0
    %952 = vmatprep.subr.mxu0 0.0
    %953 = vmatpush1.msra.mxu0 0.0
    %954 = vmatprep.subr.mxu0 0.0
    %955 = vmatpush1.msra.mxu0 0.0
    %956 = vmatprep.subr.mxu0 0.0
    %957 = vmatpush1.msra.mxu0 0.0
    %958 = vmatprep.subr.mxu0 0.0
    %959 = vmatpush1.msra.mxu0 0.0
    %960 = vmatprep.subr.mxu0 0.0
    %961 = vmatpush1.msra.mxu0 0.0
    %962 = vmatprep.subr.mxu0 0.0
    %963 = vmatpush1.msra.mxu0 0.0
    %964 = vmatprep.subr.mxu0 0.0
    %965 = vmatpush1.msra.mxu0 0.0
    %966 = vmatprep.subr.mxu0 0.0
    %967 = vmatpush1.msra.mxu0 0.0
    %968 = vmatprep.subr.mxu0 0.0
    %969 = vmatpush1.msra.mxu0 0.0
    %970 = vmatprep.subr.mxu0 0.0
    %971 = vmatpush1.msra.mxu0 0.0
    %972 = vmatprep.subr.mxu0 0.0
    %973 = vmatpush1.msra.mxu0 0.0
    %974 = vmatprep.subr.mxu0 0.0
    %975 = vmatpush1.msra.mxu0 0.0
    %976 = vmatprep.subr.mxu0 0.0
    %977 = vmatpush1.msra.mxu0 0.0
    %978 = vmatprep.subr.mxu0 0.0
    %979 = vmatpush1.msra.mxu0 0.0
    %980 = vmatprep.subr.mxu0 0.0
    %981 = vmatpush1.msra.mxu0 0.0
    %982 = vmatprep.subr.mxu0 0.0
    %983 = vmatpush1.msra.mxu0 0.0
    %984 = vmatprep.subr.mxu0 0.0
    %985 = vmatpush1.msra.mxu0 0.0
    %986 = vmatprep.subr.mxu0 0.0
    %987 = vmatpush1.msra.mxu0 0.0
    %988 = vmatprep.subr.mxu0 0.0
    %989 = vmatpush1.msra.mxu0 0.0
    %990 = vmatprep.subr.mxu0 0.0
    %991 = vmatpush1.msra.mxu0 0.0
    %992 = vmatprep.subr.mxu0 0.0
    %993 = vmatpush1.msra.mxu0 0.0
    %994 = vmatprep.subr.mxu0 0.0
    %995 = vmatpush1.msra.mxu0 0.0
    %996 = vmatprep.mubr.f32.mxu0 0.0
    %997 = vmatmul.mubr.f32.gmra.mrb[0].mxu0 %v260
    %v998 = vpop.f32.mrb[0].mxu0
    %v999 = vadd.f32 0.0, %v998
    %v1000 = vpop.f32.mrb[0].mxu0
    %1001 = vdwg.mxu0
    %1002 = vrot.lane.b32.xlu0 %v887, 32
    %v1003 = vpop.permute.xlu0 %1002
    %v1004 = vsel %vm56, %v1003, 0
    %1006 = vmatprep.subr.mxu0 0.0
    %1007 = vmatpush1.msra.mxu0 %v924
    %1008 = vmatprep.subr.mxu0 0.0
    %1009 = vmatpush1.msra.mxu0 %v925
    %1010 = vmatprep.subr.mxu0 0.0
    %1011 = vmatpush1.msra.mxu0 %v926
    %1012 = vmatprep.subr.mxu0 0.0
    %1013 = vmatpush1.msra.mxu0 %v927
    %1014 = vmatprep.subr.mxu0 0.0
    %1015 = vmatpush1.msra.mxu0 0.0
    %1016 = vmatprep.subr.mxu0 0.0
    %1017 = vmatpush1.msra.mxu0 0.0
    %1018 = vmatprep.subr.mxu0 0.0
    %1019 = vmatpush1.msra.mxu0 0.0
    %1020 = vmatprep.subr.mxu0 0.0
    %1021 = vmatpush1.msra.mxu0 0.0
    %1022 = vmatprep.subr.mxu0 0.0
    %1023 = vmatpush1.msra.mxu0 0.0
    %1024 = vmatprep.subr.mxu0 0.0
    %1025 = vmatpush1.msra.mxu0 0.0
    %1026 = vmatprep.subr.mxu0 0.0
    %1027 = vmatpush1.msra.mxu0 0.0
    %1028 = vmatprep.subr.mxu0 0.0
    %1029 = vmatpush1.msra.mxu0 0.0
    %1030 = vmatprep.subr.mxu0 0.0
    %1031 = vmatpush1.msra.mxu0 0.0
    %1032 = vmatprep.subr.mxu0 0.0
    %1033 = vmatpush1.msra.mxu0 0.0
    %1034 = vmatprep.subr.mxu0 0.0
    %1035 = vmatpush1.msra.mxu0 0.0
    %1036 = vmatprep.subr.mxu0 0.0
    %1037 = vmatpush1.msra.mxu0 0.0
    %1038 = vmatprep.subr.mxu0 0.0
    %1039 = vmatpush1.msra.mxu0 0.0
    %1040 = vmatprep.subr.mxu0 0.0
    %1041 = vmatpush1.msra.mxu0 0.0
    %1042 = vmatprep.subr.mxu0 0.0
    %1043 = vmatpush1.msra.mxu0 0.0
    %1044 = vmatprep.subr.mxu0 0.0
    %1045 = vmatpush1.msra.mxu0 0.0
    %1046 = vmatprep.subr.mxu0 0.0
    %1047 = vmatpush1.msra.mxu0 0.0
    %1048 = vmatprep.subr.mxu0 0.0
    %1049 = vmatpush1.msra.mxu0 0.0
    %1050 = vmatprep.subr.mxu0 0.0
    %1051 = vmatpush1.msra.mxu0 0.0
    %1052 = vmatprep.subr.mxu0 0.0
    %1053 = vmatpush1.msra.mxu0 0.0
    %1054 = vmatprep.subr.mxu0 0.0
    %1055 = vmatpush1.msra.mxu0 0.0
    %1056 = vmatprep.subr.mxu0 0.0
    %1057 = vmatpush1.msra.mxu0 0.0
    %1058 = vmatprep.subr.mxu0 0.0
    %1059 = vmatpush1.msra.mxu0 0.0
    %1060 = vmatprep.subr.mxu0 0.0
    %1061 = vmatpush1.msra.mxu0 0.0
    %1062 = vmatprep.subr.mxu0 0.0
    %1063 = vmatpush1.msra.mxu0 0.0
    %1064 = vmatprep.subr.mxu0 0.0
    %1065 = vmatpush1.msra.mxu0 0.0
    %1066 = vmatprep.subr.mxu0 0.0
    %1067 = vmatpush1.msra.mxu0 0.0
    %1068 = vmatprep.subr.mxu0 0.0
    %1069 = vmatpush1.msra.mxu0 0.0
    %1070 = vmatprep.mubr.f32.mxu0 0.0
    %1071 = vmatmul.mubr.f32.gmra.mrb[0].mxu0 %v1004
    %v1072 = vpop.f32.mrb[0].mxu0
    %v1073 = vadd.f32 %v999, %v1072
    %v1074 = vpop.f32.mrb[0].mxu0
    %1075 = vdwg.mxu0
    %v1076 = vld [vmem:[%s8] sm:$0x1]
    %v1077 = vadd.f32 %v1073, %v1076
    %vm1078 = vcmask 57344
    %1079 = vst.msk [vmem:[#allocation5] sm:$0x1] %vm1078, %v1077
    // Predicated region
    $region42: #{tpu_custom_call.1} parent=1 // pred_check
      _
    $region43: #{tpu_custom_call.1} parent=1 // pred_check_branch
      %1081 = sbr.rel (0) target = $region45
    $region44: #{tpu_custom_call.1} parent=1 // pred_region
      %s1083 = ssub.s32 16, 16
      %1084 = vsyncadd [#allocation4], %s1083
      %s1086 = sshll.u32 [#allocation5], 4
      %s1087 = int_to_ptr.vmem [resolvable:$true] %s1086
      %1089 = dma.vmem_to_hbm [thread:$0]  %s1087, 16, %s9, [#allocation4]
    $region45: #{tpu_custom_call.1} parent=1 // pred_fallthru
      _
    // Predicated region
    $region46: #{tpu_custom_call.1} parent=1 // pred_check
      _
    $region47: #{tpu_custom_call.1} parent=1 // pred_check_branch
      %1091 = sbr.rel (0) target = $region49
    $region48: #{tpu_custom_call.1} parent=1 // pred_region
      %s1093 = ssub.s32 128, 128
      %1094 = vsyncadd [#allocation7], %s1093
      %s1096 = sshll.u32 [#allocation6], 4
      %s1097 = int_to_ptr.vmem [resolvable:$true] %s1096
      %1099 = dma.vmem_to_hbm [thread:$0]  %s1097, 128, %s10, [#allocation7]
    $region49: #{tpu_custom_call.1} parent=1 // pred_fallthru
      _
    // Predicated region
    $region50: #{tpu_custom_call.1} parent=1 // pred_check
      _
    $region51: #{tpu_custom_call.1} parent=1 // pred_check_branch
      %1101 = sbr.rel (0) target = $region53
    $region52: #{tpu_custom_call.1} parent=1 // pred_region
      %1102 = dma.done [#allocation4], 16
    $region53: #{tpu_custom_call.1} parent=1 // pred_fallthru
      _
    // Predicated region
    $region54: #{tpu_custom_call.1} parent=1 // pred_check
      _
    $region55: #{tpu_custom_call.1} parent=1 // pred_check_branch
      %1104 = sbr.rel (0) target = $region57
    $region56: #{tpu_custom_call.1} parent=1 // pred_region
      %1105 = dma.done [#allocation7], 128
    $region57: #{tpu_custom_call.1} parent=1 // pred_fallthru
      _
    %1106 = vsyncpa [#allocation3], 1
    %1107 = vsyncpa [#allocation4], 1
    %1108 = vsyncpa [#allocation7], 1

</llo_original>
